<compile_context>
chip_gen: v7x
topology: tpu7x:2x2x1
jax: 0.10.0
libtpu: 0.0.40
codegen_flags: <defaults>
</compile_context>

<pallas_src>
import jax
import jax.numpy as jnp
from jax.experimental import pallas as pl
from jax.experimental.pallas import tpu as pltpu

_LANE = 128
_FALLBACK_COLS = 4 * _LANE        # 512, only used on the (rare) padded path
_MAX_COLS = 16 * _LANE            # 2048 cap so rows stays a workable extent
_BYPASS_BYTES = 1 << 20           # < 1 MiB -> let XLA fuse the elementwise op


def lambda_kernel(h_ref, o_ref):
    # The LambdaBlock's func, applied elementwise (tanh -> EUP slot).
    o_ref[...] = jnp.tanh(h_ref[...])


def _hw_params():
    """(target tile bytes, tensorcores per chip); generation-aware, safe fallback."""
    try:
        kind = jax.devices()[0].device_kind.lower()
    except Exception:
        return 2 * 1024 * 1024, 1
    if "v7" in kind:
        # 2 bufs x (in + out) x 4 MiB = 16 MiB, under the 32 MiB scoped default.
        return 4 * 1024 * 1024, 2
    if "v6" in kind:
        return 4 * 1024 * 1024, 1
    # v5e and older / unknown: 8 MiB live < 16 MiB scoped default.
    return 2 * 1024 * 1024, 1


def _sublane_gran(itemsize):
    # Packed-dtype sublane granularity: f32 -> 8, bf16 -> 16, int8/fp8 -> 32.
    return {4: 8, 2: 16, 1: 32}.get(itemsize, 8)


def _pick_cols(total):
    """Largest multiple of 128 (<= _MAX_COLS) dividing `total`, or None if ragged."""
    if total % _LANE != 0:
        return None
    max_k = min(total, _MAX_COLS) // _LANE
    for k in range(max_k, 0, -1):
        c = _LANE * k
        if total % c == 0:
            return c
    return None  # unreachable: k == 1 always divides once total % 128 == 0


def lambda_block_forward(h, *, force_kernel=False):
    """Apply LambdaBlock(func=tanh) via a Pallas TPU kernel (elementwise)."""
    orig_shape = h.shape
    dtype = h.dtype
    total = h.size
    itemsize = jnp.dtype(dtype).itemsize

    # Small-tensor bypass: pallas_call fixed overhead + broken XLA fusion is a
    # net loss for KB-scale activations.
    if total * itemsize < _BYPASS_BYTES and not force_kernel:
        return jnp.tanh(h)

    tile_bytes, n_cores = _hw_params()
    gran = _sublane_gran(itemsize)

    # Lane-dense slab: rows x cols with cols a multiple of 128.  Pad-free when
    # the element count allows it (the common case for NCHW activations).
    cols = _pick_cols(total)
    padded = cols is None
    if padded:
        # TODO(synk): truly ragged element count — pad-free layout impossible;
        # tanh(0)=0 so padded lanes are benign and sliced away.
        cols = _FALLBACK_COLS
    rows = pl.cdiv(total, cols)
    padded_total = rows * cols

    # Row-tile size: as big as the per-generation budget allows, multiple of
    # the packed-dtype sublane granularity.
    max_tile_r = max(gran, (tile_bytes // (cols * itemsize)) // gran * gran)
    if rows <= max_tile_r:
        tile_r = rows  # single full-extent block: always legal, no rounding/pad
        if n_cores > 1 and rows >= 2 * gran:
            # v7x: split into >=2 tiles so both TensorCores stream HBM.
            tile_r = pl.cdiv(pl.cdiv(rows, 2), gran) * gran
    else:
        tile_r = max_tile_r
    grid_r = pl.cdiv(rows, tile_r)  # ragged last tile is fine for elementwise

    flat = h.reshape(-1)
    if padded:
        flat = jnp.pad(flat, (0, padded_total - total))
    h2d = flat.reshape(rows, cols)

    out2d = pl.pallas_call(
        lambda_kernel,
        out_shape=jax.ShapeDtypeStruct((rows, cols), dtype),
        grid=(grid_r,),
        in_specs=[pl.BlockSpec((tile_r, cols), lambda i: (i, 0))],
        out_specs=pl.BlockSpec((tile_r, cols), lambda i: (i, 0)),
        compiler_params=pltpu.CompilerParams(
            # Row tiles are independent -> shard across v7x's 2 TCs; no-op on
            # single-TC v5e/v6e.
            dimension_semantics=("parallel",),
        ),
    )(h2d)

    out = out2d.reshape(-1)
    if padded:
        out = out[:total]
    return out.reshape(orig_shape)


if __name__ == "__main__":
    key = jax.random.PRNGKey(0)

    # Small NCHW input consistent with a conv-style GAN feature map.
    x = jax.random.normal(key, (2, 4, 16, 16), dtype=jnp.float32)
    y = lambda_block_forward(x, force_kernel=True)   # exercise the Pallas path
    jax.block_until_ready(y)
    assert y.shape == x.shape and y.dtype == x.dtype
    assert jnp.allclose(y, jnp.tanh(x), atol=1e-6), "mismatch vs reference"

    # Larger, non-128-lane spatial shape (28x28) -> pad-free (2048 x 49) slab.
    x2 = jax.random.normal(jax.random.PRNGKey(1), (8, 16, 28, 28), dtype=jnp.float32)
    y2 = lambda_block_forward(x2, force_kernel=True)
    jax.block_until_ready(y2)
    assert jnp.allclose(y2, jnp.tanh(x2), atol=1e-6), "mismatch vs reference (28x28)"

    # Ragged element count exercises the padding fallback path.
    x3 = jax.random.normal(jax.random.PRNGKey(2), (3, 5, 7, 11), dtype=jnp.float32)
    y3 = lambda_block_forward(x3, force_kernel=True)
    jax.block_until_ready(y3)
    assert jnp.allclose(y3, jnp.tanh(x3), atol=1e-6), "mismatch vs reference (ragged)"

    # Bypass path (small tensor, no force) for completeness.
    y4 = lambda_block_forward(x)
    jax.block_until_ready(y4)
    assert jnp.allclose(y4, jnp.tanh(x), atol=1e-6), "mismatch vs reference (bypass)"

    print("KERNEL_OK")
</pallas_src>

<mosaic_0001>
module attributes {stable_mosaic.version = 11 : i64} {
  func.func @lambda_kernel(%arg0: i32, %arg1: memref<1x2048xf32, #tpu.memory_space<vmem>>, %arg2: memref<1x2048xf32, #tpu.memory_space<vmem>>) attributes {dimension_semantics = [#tpu.dimension_semantics<parallel>], iteration_bounds = array<i64: 1>, scalar_prefetch = 0 : i64, scratch_operands = 0 : i64, tpu.core_type = #tpu.core_type<tc>, window_params = [{transform_indices = @transform_0, window_bounds = array<i64: 1, 2048>}, {transform_indices = @transform_1, window_bounds = array<i64: 1, 2048>}]} {
    %c0 = arith.constant 0 : index
    %c0_0 = arith.constant 0 : index
    %0 = vector.load %arg1[%c0, %c0_0] : memref<1x2048xf32, #tpu.memory_space<vmem>>, vector<1x2048xf32>
    %1 = math.tanh %0 : vector<1x2048xf32>
    %c0_1 = arith.constant 0 : index
    %c0_2 = arith.constant 0 : index
    %2 = vector.load %arg2[%c0_1, %c0_2] : memref<1x2048xf32, #tpu.memory_space<vmem>>, vector<1x2048xf32>
    tpu.vector_store %arg2[%c0_1, %c0_2], %1 {strides = array<i32>} : memref<1x2048xf32, #tpu.memory_space<vmem>>, vector<1x2048xf32>,
    return
  }
  func.func @transform_0(%arg0: i32) -> (i32, i32) {
    %c0_i32 = arith.constant 0 : i32
    %c0_i32_0 = arith.constant 0 : i32
    return %arg0, %c0_i32 : i32, i32
  }
  func.func @transform_1(%arg0: i32) -> (i32, i32) {
    %c0_i32 = arith.constant 0 : i32
    %c0_i32_0 = arith.constant 0 : i32
    return %arg0, %c0_i32 : i32, i32
  }
}

</mosaic_0001>

<llo_original>
// kernel: tpu_custom_call.1
$region0: #{tpu_custom_call.1}
  #allocation0 [shape = 'u32[]', space=smem, size = 0x4, offset = 0x4, fixed_abs, tag = 'smem constant byte address 0x4 - core index']
  #allocation1 [shape = 'u32[144,128]{1,0:T(1,128)}', space=vmem, size = 0x12000, scoped, tag = 'internal scratch']
  %s0 = inlined_call_operand.hbm [shape: f32[1,2048], index: 0, kind: input, shape index: {}]
  %s1 = inlined_call_operand.hbm [shape: f32[1,2048], index: 1, kind: output, shape index: {}]
  %s2 = sld [smem:[#allocation0]]
  $region18: #{tpu_custom_call.1} parent=0
    _
  %s4 = ssub.s32 1, %s2
  %s5 = scalar_select 0, %s4, %s2
  $region1: #{tpu_custom_call.1} parent=0
    #allocation2 [shape = 'u8[8192]{0}', space=vmem, size = 0x2000, scoped, tag = 'input window, operand 0, single buffered']
    #allocation3 [shape = 's32[1]{0}', space=sflag, size = 0x4, scoped, tag = 'scoped memory for tpu_custom_call.1']
    #allocation4 [shape = 's32[1]{0}', space=sflag, size = 0x4, scoped, tag = 'scoped memory for tpu_custom_call.1']
    #allocation5 [shape = 'u8[8192]{0}', space=vmem, size = 0x2000, scoped, tag = 'output window, operand 0, single buffered']
    %6 = vsyncpa [#allocation3], 0
    %7 = vsyncpa [#allocation4], 0
    // Predicated region
    $region2: #{tpu_custom_call.1} parent=1 // pred_check
      _
    $region3: #{tpu_custom_call.1} parent=1 // pred_check_branch
      %9 = sbr.rel (0) target = $region5
    $region4: #{tpu_custom_call.1} parent=1 // pred_region
      %s11 = ssub.s32 256, 256
      %12 = vsyncadd [#allocation3], %s11
      %s14 = sshll.u32 [#allocation2], 4
      %s15 = int_to_ptr.vmem [resolvable:$true] %s14
      %17 = dma.hbm_to_vmem [thread:$0]  %s0, 256, %s15, [#allocation3]
    $region5: #{tpu_custom_call.1} parent=1 // pred_fallthru
      _
    // Predicated region
    $region6: #{tpu_custom_call.1} parent=1 // pred_check
      _
    $region7: #{tpu_custom_call.1} parent=1 // pred_check_branch
      %19 = sbr.rel (0) target = $region9
    $region8: #{tpu_custom_call.1} parent=1 // pred_region
      %20 = dma.done [#allocation3], 256
    $region9: #{tpu_custom_call.1} parent=1 // pred_fallthru
      _
    %v21 = vld [vmem:[#allocation2] sm:$0xff]
    %v22 = vld [vmem:[#allocation2 + $0x8] sm:$0xff]
    %v23 = vtanh.pop %v21
    %v24 = vtanh.pop %v22
    %25 = vst [vmem:[#allocation5] sm:$0xff] %v23
    %26 = vst [vmem:[#allocation5 + $0x8] sm:$0xff] %v24
    // Predicated region
    $region10: #{tpu_custom_call.1} parent=1 // pred_check
      _
    $region11: #{tpu_custom_call.1} parent=1 // pred_check_branch
      %28 = sbr.rel (0) target = $region13
    $region12: #{tpu_custom_call.1} parent=1 // pred_region
      %s30 = ssub.s32 256, 256
      %31 = vsyncadd [#allocation4], %s30
      %s33 = sshll.u32 [#allocation5], 4
      %s34 = int_to_ptr.vmem [resolvable:$true] %s33
      %36 = dma.vmem_to_hbm [thread:$0]  %s34, 256, %s1, [#allocation4]
    $region13: #{tpu_custom_call.1} parent=1 // pred_fallthru
      _
    // Predicated region
    $region14: #{tpu_custom_call.1} parent=1 // pred_check
      _
    $region15: #{tpu_custom_call.1} parent=1 // pred_check_branch
      %38 = sbr.rel (0) target = $region17
    $region16: #{tpu_custom_call.1} parent=1 // pred_region
      %39 = dma.done [#allocation4], 256
    $region17: #{tpu_custom_call.1} parent=1 // pred_fallthru
      _
    %40 = vsyncpa [#allocation3], 1
    %41 = vsyncpa [#allocation4], 1

</llo_original>
